<compile_context>
chip_gen: v7x
topology: tpu7x:2x2x1
jax: 0.10.0
libtpu: 0.0.40
codegen_flags: <defaults>
</compile_context>

<pallas_src>
import functools

import jax
import jax.numpy as jnp
from jax import lax
from jax.experimental import pallas as pl
from jax.experimental.pallas import tpu as pltpu


def _make_kernel(num_features, inv_l, transpose_out):
    """Builds the kernel body for a fixed (static) list length."""

    def kernel(*refs):
        img_refs = refs[:num_features]
        txt_ref = refs[num_features]
        out_ref = refs[num_features + 1]
        acc_ref = refs[num_features + 2]          # (tn, D) f32 scratch

        # Accumulate the L2-normalized image features (linearity of the matmul
        # in its left operand lets us do a single matmul afterwards).
        for l, img_ref in enumerate(img_refs):
            x = img_ref[...].astype(jnp.float32)                    # (tn, D)
            sumsq = jnp.sum(x * x, axis=-1, keepdims=True)
            xn = x * lax.rsqrt(sumsq)                               # EUP rsqrt
            if l == 0:
                acc_ref[...] = xn
            else:
                acc_ref[...] += xn

        mean = acc_ref[...] * inv_l                                 # (tn, D) f32

        txt = txt_ref[...]                                          # (T, D)
        if txt.dtype != jnp.float32:
            # bf16 (or other low-precision) MXU path with f32 accumulation.
            mean = mean.astype(txt.dtype)

        contract = (((1,), (1,)), ((), ()))                         # 'nd,td' style
        if transpose_out:
            # Lane-dense output: N sits on the lane dim of the stored tile.
            sim = lax.dot_general(txt, mean, contract,
                                  preferred_element_type=jnp.float32)  # (T, tn)
        else:
            sim = lax.dot_general(mean, txt, contract,
                                  preferred_element_type=jnp.float32)  # (tn, T)

        out_ref[...] = sim.astype(out_ref.dtype)

    return kernel


def _pick_tile_n(N, D, T, L, img_itemsize, txt_itemsize, out_itemsize):
    """Largest MXU-friendly N-tile that divides N and keeps VMEM modest
    (conservative so double-buffered blocks fit v7x's smaller scoped VMEM)."""
    budget = 24 * 1024 * 1024
    for tn in (512, 256, 128, 64):
        if tn <= N and N % tn == 0:
            footprint = (L * 2 * tn * D * img_itemsize        # image blocks (x2 bufs)
                         + 2 * T * D * txt_itemsize           # text block  (x2 bufs)
                         + 2 * tn * max(T, 128) * out_itemsize  # output block
                         + tn * D * 4)                        # f32 accumulator scratch
            if footprint <= budget:
                return tn
    return N  # small / awkward N: take the whole dim (full-extent block is legal)


def text_similarity(image_features, text_features):
    """image_features: list of [B, N, D] arrays (all same shape).
       text_features : [B, T, D] array.
       returns       : [B, N, T] = mean_l( normalize(img_l) @ text^T )
    """
    image_features = list(image_features)
    L = len(image_features)
    assert L >= 1
    B, N, D = image_features[0].shape
    for f in image_features:
        assert f.shape == (B, N, D)
    Bt, T, Dt = text_features.shape
    assert B == Bt and D == Dt

    out_dtype = text_features.dtype
    img_isz = jnp.dtype(image_features[0].dtype).itemsize
    txt_isz = jnp.dtype(text_features.dtype).itemsize
    out_isz = jnp.dtype(out_dtype).itemsize

    tn = _pick_tile_n(N, D, T, L, img_isz, txt_isz, out_isz)
    n_tiles = N // tn

    # If T is lane-sparse but N is not, store a lane-dense (T, tn) tile and
    # transpose back in the wrapper (avoids masked partial stores).
    transpose_out = (T < 128) and (N > T)

    img_spec = pl.BlockSpec((None, tn, D), lambda b, n: (b, n, 0))
    txt_spec = pl.BlockSpec((None, T, D), lambda b, n: (b, 0, 0))
    if transpose_out:
        out_spec = pl.BlockSpec((None, T, tn), lambda b, n: (b, 0, n))
        out_shape = jax.ShapeDtypeStruct((B, T, N), out_dtype)
    else:
        out_spec = pl.BlockSpec((None, tn, T), lambda b, n: (b, n, 0))
        out_shape = jax.ShapeDtypeStruct((B, N, T), out_dtype)

    kernel = _make_kernel(L, 1.0 / L, transpose_out)

    cost = pl.CostEstimate(
        flops=2 * B * N * D * T + 3 * L * B * N * D,
        transcendentals=L * B * N,
        bytes_accessed=(L * B * N * D * img_isz
                        + B * T * D * txt_isz
                        + B * N * T * out_isz),
    )

    out = pl.pallas_call(
        kernel,
        out_shape=out_shape,
        grid_spec=pltpu.PrefetchScalarGridSpec(
            num_scalar_prefetch=0,
            grid=(B, n_tiles),
            in_specs=[img_spec] * L + [txt_spec],
            out_specs=out_spec,
            scratch_shapes=[pltpu.VMEM((tn, D), jnp.float32)],
        ),
        compiler_params=pltpu.CompilerParams(
            dimension_semantics=("parallel", "parallel"),
        ),
        cost_estimate=cost,
    )(*image_features, text_features)

    if transpose_out:
        out = jnp.swapaxes(out, 1, 2)
    return out


def _reference(image_features, text_features):
    sims = []
    for f in image_features:
        fn = f / jnp.linalg.norm(f, axis=-1, keepdims=True)
        sims.append(jnp.einsum("bnd,btd->bnt", fn, text_features))
    return jnp.mean(jnp.stack(sims, axis=0), axis=0)


if __name__ == "__main__":
    # Case 1: tiny shapes, f32, standard (N, T) output layout.
    L, B, N, D, T = 3, 2, 8, 32, 8
    keys = jax.random.split(jax.random.PRNGKey(0), L + 1)
    image_features = [
        jax.random.normal(keys[i], (B, N, D), dtype=jnp.float32) for i in range(L)
    ]
    text_features = jax.random.normal(keys[L], (B, T, D), dtype=jnp.float32)
    out = jax.block_until_ready(text_similarity(image_features, text_features))
    ref = _reference(image_features, text_features)
    assert out.shape == (B, N, T)
    assert jnp.allclose(out, ref, atol=1e-4, rtol=1e-4)

    # Case 2: larger N exercises N-tiling + lane-dense (transposed) output path.
    L, B, N, D, T = 2, 2, 256, 128, 8
    keys = jax.random.split(jax.random.PRNGKey(1), L + 1)
    image_features = [
        jax.random.normal(keys[i], (B, N, D), dtype=jnp.float32) for i in range(L)
    ]
    text_features = jax.random.normal(keys[L], (B, T, D), dtype=jnp.float32)
    out = jax.block_until_ready(text_similarity(image_features, text_features))
    ref = _reference(image_features, text_features)
    assert out.shape == (B, N, T)
    assert jnp.allclose(out, ref, atol=1e-4, rtol=1e-4)

    # Case 3: bf16 inputs exercise the bf16 MXU path (f32 normalization/accum).
    L, B, N, D, T = 2, 1, 128, 256, 8
    keys = jax.random.split(jax.random.PRNGKey(2), L + 1)
    image_features = [
        jax.random.normal(keys[i], (B, N, D), dtype=jnp.float32).astype(jnp.bfloat16)
        for i in range(L)
    ]
    text_features = jax.random.normal(
        keys[L], (B, T, D), dtype=jnp.float32).astype(jnp.bfloat16)
    out = jax.block_until_ready(text_similarity(image_features, text_features))
    ref = _reference([f.astype(jnp.float32) for f in image_features],
                     text_features.astype(jnp.float32))
    assert out.shape == (B, N, T)
    assert jnp.allclose(out.astype(jnp.float32), ref, atol=1e-1, rtol=1e-1)

    print("KERNEL_OK")
</pallas_src>

<mosaic_0001>
module attributes {stable_mosaic.version = 11 : i64} {
  func.func @kernel(%arg0: i32, %arg1: i32, %arg2: memref<1x8x32xf32, #tpu.memory_space<vmem>>, %arg3: memref<1x8x32xf32, #tpu.memory_space<vmem>>, %arg4: memref<1x8x32xf32, #tpu.memory_space<vmem>>, %arg5: memref<1x8x32xf32, #tpu.memory_space<vmem>>, %arg6: memref<1x8x8xf32, #tpu.memory_space<vmem>>, %arg7: memref<8x32xf32, #tpu.memory_space<vmem>>) attributes {dimension_semantics = [#tpu.dimension_semantics<parallel>, #tpu.dimension_semantics<parallel>], iteration_bounds = array<i64: 2, 1>, scalar_prefetch = 0 : i64, scratch_operands = 1 : i64, tpu.core_type = #tpu.core_type<tc>, window_params = [{transform_indices = @transform_0, window_bounds = array<i64: 1, 8, 32>}, {transform_indices = @transform_1, window_bounds = array<i64: 1, 8, 32>}, {transform_indices = @transform_2, window_bounds = array<i64: 1, 8, 32>}, {transform_indices = @transform_3, window_bounds = array<i64: 1, 8, 32>}, {transform_indices = @transform_4, window_bounds = array<i64: 1, 8, 8>}]} {
    %c0 = arith.constant 0 : index
    %c0_0 = arith.constant 0 : index
    %c0_1 = arith.constant 0 : index
    %0 = vector.load %arg2[%c0, %c0_0, %c0_1] : memref<1x8x32xf32, #tpu.memory_space<vmem>>, vector<1x8x32xf32>
    %1 = vector.shape_cast %0 : vector<1x8x32xf32> to vector<8x32xf32>
    %2 = arith.mulf %1, %1 : vector<8x32xf32>
    %cst = arith.constant dense<0.000000e+00> : vector<8xf32>
    %3 = vector.multi_reduction <add>, %2, %cst [1] : vector<8x32xf32> to vector<8xf32>
    %4 = vector.shape_cast %3 : vector<8xf32> to vector<8x1xf32>
    %5 = math.rsqrt %4 : vector<8x1xf32>
    %6 = vector.broadcast %5 : vector<8x1xf32> to vector<8x32xf32>
    %7 = arith.mulf %1, %6 : vector<8x32xf32>
    %c0_2 = arith.constant 0 : index
    %c0_3 = arith.constant 0 : index
    %8 = vector.load %arg7[%c0_2, %c0_3] : memref<8x32xf32, #tpu.memory_space<vmem>>, vector<8x32xf32>
    tpu.vector_store %arg7[%c0_2, %c0_3], %7 {strides = array<i32>} : memref<8x32xf32, #tpu.memory_space<vmem>>, vector<8x32xf32>,
    %c0_4 = arith.constant 0 : index
    %c0_5 = arith.constant 0 : index
    %c0_6 = arith.constant 0 : index
    %9 = vector.load %arg3[%c0_4, %c0_5, %c0_6] : memref<1x8x32xf32, #tpu.memory_space<vmem>>, vector<1x8x32xf32>
    %10 = vector.shape_cast %9 : vector<1x8x32xf32> to vector<8x32xf32>
    %11 = arith.mulf %10, %10 : vector<8x32xf32>
    %cst_7 = arith.constant dense<0.000000e+00> : vector<8xf32>
    %12 = vector.multi_reduction <add>, %11, %cst_7 [1] : vector<8x32xf32> to vector<8xf32>
    %13 = vector.shape_cast %12 : vector<8xf32> to vector<8x1xf32>
    %14 = math.rsqrt %13 : vector<8x1xf32>
    %15 = vector.broadcast %14 : vector<8x1xf32> to vector<8x32xf32>
    %16 = arith.mulf %10, %15 : vector<8x32xf32>
    %c0_8 = arith.constant 0 : index
    %c0_9 = arith.constant 0 : index
    %17 = vector.load %arg7[%c0_8, %c0_9] : memref<8x32xf32, #tpu.memory_space<vmem>>, vector<8x32xf32>
    %18 = arith.addf %17, %16 : vector<8x32xf32>
    %c0_10 = arith.constant 0 : index
    %c0_11 = arith.constant 0 : index
    %19 = vector.load %arg7[%c0_10, %c0_11] : memref<8x32xf32, #tpu.memory_space<vmem>>, vector<8x32xf32>
    tpu.vector_store %arg7[%c0_10, %c0_11], %18 {strides = array<i32>} : memref<8x32xf32, #tpu.memory_space<vmem>>, vector<8x32xf32>,
    %c0_12 = arith.constant 0 : index
    %c0_13 = arith.constant 0 : index
    %c0_14 = arith.constant 0 : index
    %20 = vector.load %arg4[%c0_12, %c0_13, %c0_14] : memref<1x8x32xf32, #tpu.memory_space<vmem>>, vector<1x8x32xf32>
    %21 = vector.shape_cast %20 : vector<1x8x32xf32> to vector<8x32xf32>
    %22 = arith.mulf %21, %21 : vector<8x32xf32>
    %cst_15 = arith.constant dense<0.000000e+00> : vector<8xf32>
    %23 = vector.multi_reduction <add>, %22, %cst_15 [1] : vector<8x32xf32> to vector<8xf32>
    %24 = vector.shape_cast %23 : vector<8xf32> to vector<8x1xf32>
    %25 = math.rsqrt %24 : vector<8x1xf32>
    %26 = vector.broadcast %25 : vector<8x1xf32> to vector<8x32xf32>
    %27 = arith.mulf %21, %26 : vector<8x32xf32>
    %c0_16 = arith.constant 0 : index
    %c0_17 = arith.constant 0 : index
    %28 = vector.load %arg7[%c0_16, %c0_17] : memref<8x32xf32, #tpu.memory_space<vmem>>, vector<8x32xf32>
    %29 = arith.addf %28, %27 : vector<8x32xf32>
    %c0_18 = arith.constant 0 : index
    %c0_19 = arith.constant 0 : index
    %30 = vector.load %arg7[%c0_18, %c0_19] : memref<8x32xf32, #tpu.memory_space<vmem>>, vector<8x32xf32>
    tpu.vector_store %arg7[%c0_18, %c0_19], %29 {strides = array<i32>} : memref<8x32xf32, #tpu.memory_space<vmem>>, vector<8x32xf32>,
    %c0_20 = arith.constant 0 : index
    %c0_21 = arith.constant 0 : index
    %31 = vector.load %arg7[%c0_20, %c0_21] : memref<8x32xf32, #tpu.memory_space<vmem>>, vector<8x32xf32>
    %cst_22 = arith.constant 0.333333343 : f32
    %32 = vector.broadcast %cst_22 : f32 to vector<8x32xf32>
    %33 = arith.mulf %31, %32 : vector<8x32xf32>
    %c0_23 = arith.constant 0 : index
    %c0_24 = arith.constant 0 : index
    %c0_25 = arith.constant 0 : index
    %34 = vector.load %arg5[%c0_23, %c0_24, %c0_25] : memref<1x8x32xf32, #tpu.memory_space<vmem>>, vector<1x8x32xf32>
    %35 = vector.shape_cast %34 : vector<1x8x32xf32> to vector<8x32xf32>
    %cst_26 = arith.constant dense<0.000000e+00> : vector<8x8xf32>
    %36 = tpu.matmul %33, %35, %cst_26 {dimension_numbers = #tpu.dot_dimension_numbers<[1], [1], [0], [0], [0, 0, 1, 0], [], []>} : vector<8x32xf32>, vector<8x32xf32>, vector<8x8xf32> -> vector<8x8xf32>
    %c0_27 = arith.constant 0 : index
    %c0_28 = arith.constant 0 : index
    %c0_29 = arith.constant 0 : index
    %37 = vector.load %arg6[%c0_27, %c0_28, %c0_29] : memref<1x8x8xf32, #tpu.memory_space<vmem>>, vector<1x8x8xf32>
    %38 = vector.shape_cast %37 : vector<1x8x8xf32> to vector<8x8xf32>
    %39 = vector.shape_cast %36 : vector<8x8xf32> to vector<1x8x8xf32>
    tpu.vector_store %arg6[%c0_27, %c0_28, %c0_29], %39 {strides = array<i32>} : memref<1x8x8xf32, #tpu.memory_space<vmem>>, vector<1x8x8xf32>,
    return
  }
  func.func @transform_0(%arg0: i32, %arg1: i32) -> (i32, i32, i32) {
    %c0_i32 = arith.constant 0 : i32
    %c0_i32_0 = arith.constant 0 : i32
    return %arg0, %arg1, %c0_i32 : i32, i32, i32
  }
  func.func @transform_1(%arg0: i32, %arg1: i32) -> (i32, i32, i32) {
    %c0_i32 = arith.constant 0 : i32
    %c0_i32_0 = arith.constant 0 : i32
    return %arg0, %arg1, %c0_i32 : i32, i32, i32
  }
  func.func @transform_2(%arg0: i32, %arg1: i32) -> (i32, i32, i32) {
    %c0_i32 = arith.constant 0 : i32
    %c0_i32_0 = arith.constant 0 : i32
    return %arg0, %arg1, %c0_i32 : i32, i32, i32
  }
  func.func @transform_3(%arg0: i32, %arg1: i32) -> (i32, i32, i32) {
    %c0_i32 = arith.constant 0 : i32
    %c0_i32_0 = arith.constant 0 : i32
    %c0_i32_1 = arith.constant 0 : i32
    return %arg0, %c0_i32, %c0_i32_0 : i32, i32, i32
  }
  func.func @transform_4(%arg0: i32, %arg1: i32) -> (i32, i32, i32) {
    %c0_i32 = arith.constant 0 : i32
    %c0_i32_0 = arith.constant 0 : i32
    return %arg0, %arg1, %c0_i32 : i32, i32, i32
  }
}

</mosaic_0001>

<llo_original>
// kernel: tpu_custom_call.1
$region0: #{tpu_custom_call.1}
  #allocation0 [shape = 'u32[]', space=smem, size = 0x4, offset = 0x4, fixed_abs, tag = 'smem constant byte address 0x4 - core index']
  #allocation1 [shape = 'u32[144,128]{1,0:T(1,128)}', space=vmem, size = 0x12000, scoped, tag = 'internal scratch']
  #allocation2 [shape = 'f32[8,32]{1,0:T(8,128)}', space=vmem, size = 0x1000, scoped, tag = 'scratch operand']
  %s0 = inlined_call_operand.hbm [shape: f32[2,8,32], index: 0, kind: input, shape index: {}]
  %s1 = inlined_call_operand.hbm [shape: f32[2,8,32], index: 1, kind: input, shape index: {}]
  %s2 = inlined_call_operand.hbm [shape: f32[2,8,32], index: 2, kind: input, shape index: {}]
  %s3 = inlined_call_operand.hbm [shape: f32[2,8,32], index: 3, kind: input, shape index: {}]
  %s4 = inlined_call_operand.hbm [shape: f32[2,8,8], index: 4, kind: output, shape index: {}]
  %s5 = sld [smem:[#allocation0]]
  $region65: #{tpu_custom_call.1} parent=0
    _
  %s7 = ssub.s32 1, %s5
  %s8 = scalar_select 0, %s7, %s5
  $region1: #{tpu_custom_call.1} parent=0
    #allocation3 [shape = 'u8[8192]{0}', space=vmem, size = 0x2000, scoped, tag = 'input window, operand 0']
    #allocation4 [shape = 's32[2]{0}', space=sflag, size = 0x8, scoped, tag = 'scoped memory for tpu_custom_call.1']
    #allocation5 [shape = 's32[2]{0}', space=sflag, size = 0x8, scoped, tag = 'scoped memory for tpu_custom_call.1']
    #allocation6 [shape = 'u8[8192]{0}', space=vmem, size = 0x2000, scoped, tag = 'input window, operand 1']
    #allocation7 [shape = 's32[2]{0}', space=sflag, size = 0x8, scoped, tag = 'scoped memory for tpu_custom_call.1']
    #allocation8 [shape = 'u8[8192]{0}', space=vmem, size = 0x2000, scoped, tag = 'input window, operand 2']
    #allocation9 [shape = 'u8[8192]{0}', space=vmem, size = 0x2000, scoped, tag = 'input window, operand 3']
    #allocation10 [shape = 's32[2]{0}', space=sflag, size = 0x8, scoped, tag = 'scoped memory for tpu_custom_call.1']
    #allocation11 [shape = 'u8[8192]{0}', space=vmem, size = 0x2000, scoped, tag = 'output window, operand 0']
    %9 = vsyncpa [#allocation4], 0
    %s10 = scalar_lea.sflag [#allocation4], 1
    %11 = vsyncpa %s10, 0
    %12 = vsyncpa [#allocation7], 0
    %s13 = scalar_lea.sflag [#allocation7], 1
    %14 = vsyncpa %s13, 0
    %15 = vsyncpa [#allocation10], 0
    %s16 = scalar_lea.sflag [#allocation10], 1
    %17 = vsyncpa %s16, 0
    %18 = vsyncpa [#allocation5], 0
    %s19 = scalar_lea.sflag [#allocation5], 1
    %20 = vsyncpa %s19, 0
    loop: start=0, step=1, limit=4
    $region2: #{tpu_custom_call.1} parent=1 // loop_pre_header
      _
    $region3: #{tpu_custom_call.1} parent=1 // loop_header
      %s22 = sphi 0, %s26
      %p23 = scmp.ge.s32.totalorder %s22, 4
      %s29 = sphi 0, %s41
      %s30 = sphi 0, %s37
      %s31 = sphi 0, %s29
      %s32 = sphi 0, %s30
      %s33 = sphi 0, %s31
      %s34 = sphi 0, %s32
      %s46 = sphi 0, %s48
      %s49 = sphi 0, %s46
      %s50 = sphi 0, %s49
      %s66 = sphi 0, %s50
      %s74 = sphi 0, %s76
      %s77 = sphi 0, %s74
      %s78 = sphi 0, %s77
      %s94 = sphi 0, %s78
      %s102 = sphi 0, %s104
      %s105 = sphi 0, %s102
      %s106 = sphi 0, %s105
      %s122 = sphi 0, %s106
      %s128 = sphi 0, %s130
      %s131 = sphi 0, %s128
      %s132 = sphi 0, %s131
      %s148 = sphi 0, %s132
      %s156 = sphi 0, %s158
      %s159 = sphi 0, %s156
      %s160 = sphi 0, %s159
      %s176 = sphi 0, %s160
    $region4: #{tpu_custom_call.1} parent=1 // loop_header_branch
      %25 = sbr.rel (%p23) target = $region8
    $region5: #{tpu_custom_call.1} parent=1 // loop_body
      %s27 = ssub.s32 %s22, 1
      %s28 = ssub.s32 %s22, 2
      %s35 = sadd.s32 1, %s30
      %p36 = scmp.ge.s32.totalorder %s35, 1
      %s37 = scalar_select %p36, 0, %s35
      %s38 = sadd.s32 1, %s29
      %s39 = scalar_select %p36, %s38, %s29
      %p40 = scmp.ge.s32.totalorder %s39, 2
      %s41 = scalar_select %p40, 0, %s39
      %s42 = ssub.s32 %s29, %s41
      %s43 = ssub.s32 %s30, %s37
      %s44 = sor.u32 %s42, %s43
      %p45 = scmp.eq.s32.totalorder %s44, 0
      %s47 = sadd.s32 %s46, 1
      %s48 = scalar_select %p45, %s46, %s47
      %p51 = pneg %p45
      %p52 = scmp.eq.s32.totalorder %s22, 1
      %p53 = por %p51, %p52
      %p54 = scmp.ne.s32.totalorder %s46, %s49
      %p55 = scmp.eq.s32.totalorder %s22, 0
      %p56 = por %p54, %p55
      %p57 = scmp.ne.s32.totalorder %s46, %s49
      %p58 = scmp.eq.s32.totalorder %s27, 1
      %p59 = por %p57, %p58
      %p60 = scmp.ne.s32.totalorder %s49, %s50
      %p61 = scmp.eq.s32.totalorder %s27, 0
      %p62 = por %p60, %p61
      %p63 = scmp.ne.s32.totalorder %s49, %s50
      %p64 = scmp.eq.s32.totalorder %s28, 1
      %p65 = por %p63, %p64
      %p67 = scmp.ne.s32.totalorder %s50, %s66
      %p68 = scmp.eq.s32.totalorder %s28, 0
      %p69 = por %p67, %p68
      %s70 = ssub.s32 %s29, %s41
      %s71 = ssub.s32 %s30, %s37
      %s72 = sor.u32 %s70, %s71
      %p73 = scmp.eq.s32.totalorder %s72, 0
      %s75 = sadd.s32 %s74, 1
      %s76 = scalar_select %p73, %s74, %s75
      %p79 = pneg %p73
      %p80 = scmp.eq.s32.totalorder %s22, 1
      %p81 = por %p79, %p80
      %p82 = scmp.ne.s32.totalorder %s74, %s77
      %p83 = scmp.eq.s32.totalorder %s22, 0
      %p84 = por %p82, %p83
      %p85 = scmp.ne.s32.totalorder %s74, %s77
      %p86 = scmp.eq.s32.totalorder %s27, 1
      %p87 = por %p85, %p86
      %p88 = scmp.ne.s32.totalorder %s77, %s78
      %p89 = scmp.eq.s32.totalorder %s27, 0
      %p90 = por %p88, %p89
      %p91 = scmp.ne.s32.totalorder %s77, %s78
      %p92 = scmp.eq.s32.totalorder %s28, 1
      %p93 = por %p91, %p92
      %p95 = scmp.ne.s32.totalorder %s78, %s94
      %p96 = scmp.eq.s32.totalorder %s28, 0
      %p97 = por %p95, %p96
      %s98 = ssub.s32 %s29, %s41
      %s99 = ssub.s32 %s30, %s37
      %s100 = sor.u32 %s98, %s99
      %p101 = scmp.eq.s32.totalorder %s100, 0
      %s103 = sadd.s32 %s102, 1
      %s104 = scalar_select %p101, %s102, %s103
      %p107 = pneg %p101
      %p108 = scmp.eq.s32.totalorder %s22, 1
      %p109 = por %p107, %p108
      %p110 = scmp.ne.s32.totalorder %s102, %s105
      %p111 = scmp.eq.s32.totalorder %s22, 0
      %p112 = por %p110, %p111
      %p113 = scmp.ne.s32.totalorder %s102, %s105
      %p114 = scmp.eq.s32.totalorder %s27, 1
      %p115 = por %p113, %p114
      %p116 = scmp.ne.s32.totalorder %s105, %s106
      %p117 = scmp.eq.s32.totalorder %s27, 0
      %p118 = por %p116, %p117
      %p119 = scmp.ne.s32.totalorder %s105, %s106
      %p120 = scmp.eq.s32.totalorder %s28, 1
      %p121 = por %p119, %p120
      %p123 = scmp.ne.s32.totalorder %s106, %s122
      %p124 = scmp.eq.s32.totalorder %s28, 0
      %p125 = por %p123, %p124
      %s126 = ssub.s32 %s29, %s41
      %p127 = scmp.eq.s32.totalorder %s126, 0
      %s129 = sadd.s32 %s128, 1
      %s130 = scalar_select %p127, %s128, %s129
      %p133 = pneg %p127
      %p134 = scmp.eq.s32.totalorder %s22, 1
      %p135 = por %p133, %p134
      %p136 = scmp.ne.s32.totalorder %s128, %s131
      %p137 = scmp.eq.s32.totalorder %s22, 0
      %p138 = por %p136, %p137
      %p139 = scmp.ne.s32.totalorder %s128, %s131
      %p140 = scmp.eq.s32.totalorder %s27, 1
      %p141 = por %p139, %p140
      %p142 = scmp.ne.s32.totalorder %s131, %s132
      %p143 = scmp.eq.s32.totalorder %s27, 0
      %p144 = por %p142, %p143
      %p145 = scmp.ne.s32.totalorder %s131, %s132
      %p146 = scmp.eq.s32.totalorder %s28, 1
      %p147 = por %p145, %p146
      %p149 = scmp.ne.s32.totalorder %s132, %s148
      %p150 = scmp.eq.s32.totalorder %s28, 0
      %p151 = por %p149, %p150
      %s152 = ssub.s32 %s29, %s41
      %s153 = ssub.s32 %s30, %s37
      %s154 = sor.u32 %s152, %s153
      %p155 = scmp.eq.s32.totalorder %s154, 0
      %s157 = sadd.s32 %s156, 1
      %s158 = scalar_select %p155, %s156, %s157
      %p161 = pneg %p155
      %p162 = scmp.eq.s32.totalorder %s22, 1
      %p163 = por %p161, %p162
      %p164 = scmp.ne.s32.totalorder %s156, %s159
      %p165 = scmp.eq.s32.totalorder %s22, 0
      %p166 = por %p164, %p165
      %p167 = scmp.ne.s32.totalorder %s156, %s159
      %p168 = scmp.eq.s32.totalorder %s27, 1
      %p169 = por %p167, %p168
      %p170 = scmp.ne.s32.totalorder %s159, %s160
      %p171 = scmp.eq.s32.totalorder %s27, 0
      %p172 = por %p170, %p171
      %p173 = scmp.ne.s32.totalorder %s159, %s160
      %p174 = scmp.eq.s32.totalorder %s28, 1
      %p175 = por %p173, %p174
      %p177 = scmp.ne.s32.totalorder %s160, %s176
      %p178 = scmp.eq.s32.totalorder %s28, 0
      %p179 = por %p177, %p178
      %p180 = scmp.le.s32.totalorder 1, %s22
      %p181 = scmp.lt.s32.totalorder %s22, 3
      %p182 = pnand %p180, %p181
      %p183 = pneg %p182
      // Predicated region
      $region9: #{tpu_custom_call.1} parent=5 // pred_check
        _
      $region10: #{tpu_custom_call.1} parent=5 // pred_check_branch
        %185 = sbr.rel (%p182) target = $region12
      $region11: #{tpu_custom_call.1} parent=5 // pred_region
        %s186 = ssub.s32 %s22, 1
      $region12: #{tpu_custom_call.1} parent=5 // pred_fallthru
        _
      %p187 = scmp.lt.s32.totalorder %s22, 2
      // Predicated region
      $region13: #{tpu_custom_call.1} parent=5 // pred_check
        %p188 = pneg %p187
      $region14: #{tpu_custom_call.1} parent=5 // pred_check_branch
        %190 = sbr.rel (%p188) target = $region16
      $region15: #{tpu_custom_call.1} parent=5 // pred_region
        // Predicated region
        $region17: #{tpu_custom_call.1} parent=15 // pred_check
          %p191 = pneg %p56
        $region18: #{tpu_custom_call.1} parent=15 // pred_check_branch
          %193 = sbr.rel (%p191) target = $region20
        $region19: #{tpu_custom_call.1} parent=15 // pred_region
          %s194 = sand.u32 %s46, 1
          %s195 = scalar_lea.sflag [#allocation4], %s194
          %s196 = sand.u32 %s46, 1
          %s197 = smul.addr %s196, 8
          %s198 = scalar_lea.vmem [#allocation3], %s197
          %s200 = ssub.s32 128, 128
          %201 = vsyncadd %s195, %s200
          %s202 = sadd.s32 %s30, %s29
          %s203 = smul.addr %s202, 128
          %s204 = scalar_lea.hbm %s0, %s203
          %s206 = sshll.u32 %s198, 4
          %s207 = int_to_ptr.vmem [resolvable:$true] %s206
          %209 = dma.hbm_to_vmem [thread:$0]  %s204, 128, %s207, %s195
        $region20: #{tpu_custom_call.1} parent=15 // pred_fallthru
          _
        // Predicated region
        $region21: #{tpu_custom_call.1} parent=15 // pred_check
          %p210 = pneg %p84
        $region22: #{tpu_custom_call.1} parent=15 // pred_check_branch
          %212 = sbr.rel (%p210) target = $region24
        $region23: #{tpu_custom_call.1} parent=15 // pred_region
          %s213 = sand.u32 %s22, 1
          %s214 = scalar_lea.sflag [#allocation7], %s213
          %s215 = sand.u32 %s74, 1
          %s216 = smul.addr %s215, 8
          %s217 = scalar_lea.vmem [#allocation6], %s216
          %s219 = ssub.s32 128, 128
          %220 = vsyncadd %s214, %s219
          %s221 = sadd.s32 %s30, %s29
          %s222 = smul.addr %s221, 128
          %s223 = scalar_lea.hbm %s1, %s222
          %s225 = sshll.u32 %s217, 4
          %s226 = int_to_ptr.vmem [resolvable:$true] %s225
          %228 = dma.hbm_to_vmem [thread:$0]  %s223, 128, %s226, %s214
        $region24: #{tpu_custom_call.1} parent=15 // pred_fallthru
          _
        // Predicated region
        $region25: #{tpu_custom_call.1} parent=15 // pred_check
          %p229 = pneg %p112
        $region26: #{tpu_custom_call.1} parent=15 // pred_check_branch
          %231 = sbr.rel (%p229) target = $region28
        $region27: #{tpu_custom_call.1} parent=15 // pred_region
          %s232 = sand.u32 %s22, 1
          %s233 = scalar_lea.sflag [#allocation7], %s232
          %s234 = sand.u32 %s102, 1
          %s235 = smul.addr %s234, 8
          %s236 = scalar_lea.vmem [#allocation8], %s235
          %s238 = ssub.s32 128, 128
          %239 = vsyncadd %s233, %s238
          %s240 = sadd.s32 %s30, %s29
          %s241 = smul.addr %s240, 128
          %s242 = scalar_lea.hbm %s2, %s241
          %s244 = sshll.u32 %s236, 4
          %s245 = int_to_ptr.vmem [resolvable:$true] %s244
          %247 = dma.hbm_to_vmem [thread:$0]  %s242, 128, %s245, %s233
        $region28: #{tpu_custom_call.1} parent=15 // pred_fallthru
          _
        // Predicated region
        $region29: #{tpu_custom_call.1} parent=15 // pred_check
          %p248 = pneg %p138
        $region30: #{tpu_custom_call.1} parent=15 // pred_check_branch
          %250 = sbr.rel (%p248) target = $region32
        $region31: #{tpu_custom_call.1} parent=15 // pred_region
          %s251 = sand.u32 %s128, 1
          %s252 = scalar_lea.sflag [#allocation10], %s251
          %s253 = sand.u32 %s128, 1
          %s254 = smul.addr %s253, 8
          %s255 = scalar_lea.vmem [#allocation9], %s254
          %s257 = ssub.s32 128, 128
          %258 = vsyncadd %s252, %s257
          %s259 = smul.addr %s29, 128
          %s260 = scalar_lea.hbm %s3, %s259
          %s262 = sshll.u32 %s255, 4
          %s263 = int_to_ptr.vmem [resolvable:$true] %s262
          %265 = dma.hbm_to_vmem [thread:$0]  %s260, 128, %s263, %s252
        $region32: #{tpu_custom_call.1} parent=15 // pred_fallthru
          _
      $region16: #{tpu_custom_call.1} parent=5 // pred_fallthru
        _
      %p266 = scmp.le.s32.totalorder 1, %s22
      %p267 = scmp.lt.s32.totalorder %s22, 3
      %p268 = pnand %p266, %p267
      %p269 = pneg %p268
      // Predicated region
      $region33: #{tpu_custom_call.1} parent=5 // pred_check
        _
      $region34: #{tpu_custom_call.1} parent=5 // pred_check_branch
        %271 = sbr.rel (%p268) target = $region36
      $region35: #{tpu_custom_call.1} parent=5 // pred_region
        %s272 = ssub.s32 %s22, 1
        %s273 = sand.u32 %s49, 1
        %s274 = scalar_lea.sflag [#allocation4], %s273
        %s275 = sand.u32 %s49, 1
        %s276 = smul.addr %s275, 8
        %s277 = scalar_lea.vmem [#allocation3], %s276
        // Predicated region
        $region37: #{tpu_custom_call.1} parent=35 // pred_check
          %p278 = pneg %p62
        $region38: #{tpu_custom_call.1} parent=35 // pred_check_branch
          %280 = sbr.rel (%p278) target = $region40
        $region39: #{tpu_custom_call.1} parent=35 // pred_region
          %281 = dma.done %s274, 128
        $region40: #{tpu_custom_call.1} parent=35 // pred_fallthru
          _
        %s282 = sand.u32 %s27, 1
        %s283 = scalar_lea.sflag [#allocation7], %s282
        %s284 = sand.u32 %s77, 1
        %s285 = smul.addr %s284, 8
        %s286 = scalar_lea.vmem [#allocation6], %s285
        // Predicated region
        $region41: #{tpu_custom_call.1} parent=35 // pred_check
          %p287 = pneg %p90
        $region42: #{tpu_custom_call.1} parent=35 // pred_check_branch
          %289 = sbr.rel (%p287) target = $region44
        $region43: #{tpu_custom_call.1} parent=35 // pred_region
          %290 = dma.done %s283, 128
        $region44: #{tpu_custom_call.1} parent=35 // pred_fallthru
          _
        %s291 = sand.u32 %s27, 1
        %s292 = scalar_lea.sflag [#allocation7], %s291
        %s293 = sand.u32 %s105, 1
        %s294 = smul.addr %s293, 8
        %s295 = scalar_lea.vmem [#allocation8], %s294
        // Predicated region
        $region45: #{tpu_custom_call.1} parent=35 // pred_check
          %p296 = pneg %p118
        $region46: #{tpu_custom_call.1} parent=35 // pred_check_branch
          %298 = sbr.rel (%p296) target = $region48
        $region47: #{tpu_custom_call.1} parent=35 // pred_region
          %299 = dma.done %s292, 128
        $region48: #{tpu_custom_call.1} parent=35 // pred_fallthru
          _
        %s300 = sand.u32 %s131, 1
        %s301 = scalar_lea.sflag [#allocation10], %s300
        %s302 = sand.u32 %s131, 1
        %s303 = smul.addr %s302, 8
        %s304 = scalar_lea.vmem [#allocation9], %s303
        // Predicated region
        $region49: #{tpu_custom_call.1} parent=35 // pred_check
          %p305 = pneg %p144
        $region50: #{tpu_custom_call.1} parent=35 // pred_check_branch
          %307 = sbr.rel (%p305) target = $region52
        $region51: #{tpu_custom_call.1} parent=35 // pred_region
          %308 = dma.done %s301, 128
        $region52: #{tpu_custom_call.1} parent=35 // pred_fallthru
          _
        %s309 = sand.u32 %s49, 1
        %s310 = scalar_lea.sflag [#allocation4], %s309
        %s311 = sand.u32 %s49, 1
        %s312 = smul.addr %s311, 8
        %s313 = scalar_lea.vmem [#allocation3], %s312
        %p314 = pneg %p62
        %p315 = pneg %p59
        %s316 = sand.u32 %s27, 1
        %s317 = scalar_lea.sflag [#allocation7], %s316
        %s318 = sand.u32 %s77, 1
        %s319 = smul.addr %s318, 8
        %s320 = scalar_lea.vmem [#allocation6], %s319
        %p321 = pneg %p90
        %p322 = pneg %p87
        %s323 = sand.u32 %s27, 1
        %s324 = scalar_lea.sflag [#allocation7], %s323
        %s325 = sand.u32 %s105, 1
        %s326 = smul.addr %s325, 8
        %s327 = scalar_lea.vmem [#allocation8], %s326
        %p328 = pneg %p118
        %p329 = pneg %p115
        %s330 = sand.u32 %s131, 1
        %s331 = scalar_lea.sflag [#allocation10], %s330
        %s332 = sand.u32 %s131, 1
        %s333 = smul.addr %s332, 8
        %s334 = scalar_lea.vmem [#allocation9], %s333
        %p335 = pneg %p144
        %p336 = pneg %p141
        %p337 = pneg %p172
        %p338 = pneg %p169
        %s339 = sand.u32 %s159, 1
        %s340 = scalar_lea.sflag [#allocation5], %s339
        %s341 = sand.u32 %s159, 1
        %s342 = smul.addr %s341, 8
        %s343 = scalar_lea.vmem [#allocation11], %s342
        %v344 = vld [vmem:[%s277] sm:$0xff]
        %v345 = vmul.f32 %v344, %v344
        %vm346 = vcmask 261120
        %v347 = vsel %vm346, %v345, 0.0
        %348 = vadd.xlane.f32.xlu0 %v347
        %v349 = vpop.xlane.xlu0 %348
        %v350 = vrsqrt.pop %v349
        %v351 = vmul.f32 %v344, %v350
        %352 = vst.msk [vmem:[#allocation2] sm:$0xff] %vm346, %v351
        %v353 = vld [vmem:[%s286] sm:$0xff]
        %v354 = vmul.f32 %v353, %v353
        %v355 = vsel %vm346, %v354, 0.0
        %356 = vadd.xlane.f32.xlu0 %v355
        %v357 = vpop.xlane.xlu0 %356
        %v358 = vrsqrt.pop %v357
        %v359 = vmul.f32 %v353, %v358
        %v360 = vld [vmem:[#allocation2] sm:$0xff]
        %v361 = vadd.f32 %v360, %v359
        %362 = vst.msk [vmem:[#allocation2] sm:$0xff] %vm346, %v361
        %v363 = vld [vmem:[%s295] sm:$0xff]
        %v364 = vmul.f32 %v363, %v363
        %v365 = vsel %vm346, %v364, 0.0
        %366 = vadd.xlane.f32.xlu0 %v365
        %v367 = vpop.xlane.xlu0 %366
        %v368 = vrsqrt.pop %v367
        %v369 = vmul.f32 %v363, %v368
        %v370 = vld [vmem:[#allocation2] sm:$0xff]
        %v371 = vadd.f32 %v370, %v369
        %372 = vst.msk [vmem:[#allocation2] sm:$0xff] %vm346, %v371
        %v373 = vld [vmem:[#allocation2] sm:$0xff]
        %v374 = vmul.f32 %v373, 0.33333334
        %v375 = vld [vmem:[%s304] sm:$0xff]
        %v377 = vsel %vm346, %v374, 0
        %v380 = vsel %vm346, %v375, 0
        %382 = vmatprep.subr.mxu0 0.0
        %383 = vmatpush1.xpose.msra.mxu0 %v380
        %384 = vmatprep.subr.mxu0 0.0
        %385 = vmatpush1.xpose.msra.mxu0 0.0
        %386 = vmatprep.subr.mxu0 0.0
        %387 = vmatpush1.xpose.msra.mxu0 0.0
        %388 = vmatprep.subr.mxu0 0.0
        %389 = vmatpush1.xpose.msra.mxu0 0.0
        %390 = vmatprep.subr.mxu0 0.0
        %391 = vmatpush1.xpose.msra.mxu0 0.0
        %392 = vmatprep.subr.mxu0 0.0
        %393 = vmatpush1.xpose.msra.mxu0 0.0
        %394 = vmatprep.subr.mxu0 0.0
        %395 = vmatpush1.xpose.msra.mxu0 0.0
        %396 = vmatprep.subr.mxu0 0.0
        %397 = vmatpush1.xpose.msra.mxu0 0.0
        %398 = vmatprep.subr.mxu0 0.0
        %399 = vmatpush1.xpose.msra.mxu0 0.0
        %400 = vmatprep.subr.mxu0 0.0
        %401 = vmatpush1.xpose.msra.mxu0 0.0
        %402 = vmatprep.subr.mxu0 0.0
        %403 = vmatpush1.xpose.msra.mxu0 0.0
        %404 = vmatprep.subr.mxu0 0.0
        %405 = vmatpush1.xpose.msra.mxu0 0.0
        %406 = vmatprep.subr.mxu0 0.0
        %407 = vmatpush1.xpose.msra.mxu0 0.0
        %408 = vmatprep.subr.mxu0 0.0
        %409 = vmatpush1.xpose.msra.mxu0 0.0
        %410 = vmatprep.subr.mxu0 0.0
        %411 = vmatpush1.xpose.msra.mxu0 0.0
        %412 = vmatprep.subr.mxu0 0.0
        %413 = vmatpush1.xpose.msra.mxu0 0.0
        %414 = vmatprep.subr.mxu0 0.0
        %415 = vmatpush1.xpose.msra.mxu0 0.0
        %416 = vmatprep.subr.mxu0 0.0
        %417 = vmatpush1.xpose.msra.mxu0 0.0
        %418 = vmatprep.subr.mxu0 0.0
        %419 = vmatpush1.xpose.msra.mxu0 0.0
        %420 = vmatprep.subr.mxu0 0.0
        %421 = vmatpush1.xpose.msra.mxu0 0.0
        %422 = vmatprep.subr.mxu0 0.0
        %423 = vmatpush1.xpose.msra.mxu0 0.0
        %424 = vmatprep.subr.mxu0 0.0
        %425 = vmatpush1.xpose.msra.mxu0 0.0
        %426 = vmatprep.subr.mxu0 0.0
        %427 = vmatpush1.xpose.msra.mxu0 0.0
        %428 = vmatprep.subr.mxu0 0.0
        %429 = vmatpush1.xpose.msra.mxu0 0.0
        %430 = vmatprep.subr.mxu0 0.0
        %431 = vmatpush1.xpose.msra.mxu0 0.0
        %432 = vmatprep.subr.mxu0 0.0
        %433 = vmatpush1.xpose.msra.mxu0 0.0
        %434 = vmatprep.subr.mxu0 0.0
        %435 = vmatpush1.xpose.msra.mxu0 0.0
        %436 = vmatprep.subr.mxu0 0.0
        %437 = vmatpush1.xpose.msra.mxu0 0.0
        %438 = vmatprep.subr.mxu0 0.0
        %439 = vmatpush1.xpose.msra.mxu0 0.0
        %440 = vmatprep.subr.mxu0 0.0
        %441 = vmatpush1.xpose.msra.mxu0 0.0
        %442 = vmatprep.subr.mxu0 0.0
        %443 = vmatpush1.xpose.msra.mxu0 0.0
        %444 = vmatprep.subr.mxu0 0.0
        %445 = vmatpush1.xpose.msra.mxu0 0.0
        %446 = vmatprep.mubr.f32.mxu0 0.0
        %447 = vmatmul.mubr.f32.gmra.mrb[0].mxu0 %v377
        %v448 = vpop.f32.mrb[0].mxu0
        %v449 = vadd.f32 0.0, %v448
        %v450 = vpop.f32.mrb[0].mxu0
        %451 = vdwg.mxu0
        %vm452 = vcmask 64512
        %453 = vst.msk [vmem:[%s343] sm:$0xff] %vm452, %v449
        %s454 = sand.u32 %s159, 1
        %s455 = scalar_lea.sflag [#allocation5], %s454
        %s456 = sand.u32 %s159, 1
        %s457 = smul.addr %s456, 8
        %s458 = scalar_lea.vmem [#allocation11], %s457
        // Predicated region
        $region53: #{tpu_custom_call.1} parent=35 // pred_check
          %p459 = pneg %p169
        $region54: #{tpu_custom_call.1} parent=35 // pred_check_branch
          %461 = sbr.rel (%p459) target = $region56
        $region55: #{tpu_custom_call.1} parent=35 // pred_region
          %s463 = ssub.s32 128, 128
          %464 = vsyncadd %s455, %s463
          %s465 = sadd.s32 %s32, %s31
          %s466 = smul.addr %s465, 128
          %s467 = scalar_lea.hbm %s4, %s466
          %s469 = sshll.u32 %s458, 4
          %s470 = int_to_ptr.vmem [resolvable:$true] %s469
          %472 = dma.vmem_to_hbm [thread:$0]  %s470, 128, %s467, %s455
        $region56: #{tpu_custom_call.1} parent=35 // pred_fallthru
          _
      $region36: #{tpu_custom_call.1} parent=5 // pred_fallthru
        _
      %p473 = scmp.le.s32.totalorder 2, %s22
      // Predicated region
      $region57: #{tpu_custom_call.1} parent=5 // pred_check
        %p474 = pneg %p473
      $region58: #{tpu_custom_call.1} parent=5 // pred_check_branch
        %476 = sbr.rel (%p474) target = $region60
      $region59: #{tpu_custom_call.1} parent=5 // pred_region
        %s477 = ssub.s32 %s22, 2
        // Predicated region
        $region61: #{tpu_custom_call.1} parent=59 // pred_check
          %p478 = pneg %p175
        $region62: #{tpu_custom_call.1} parent=59 // pred_check_branch
          %480 = sbr.rel (%p478) target = $region64
        $region63: #{tpu_custom_call.1} parent=59 // pred_region
          %s481 = sand.u32 %s160, 1
          %s482 = scalar_lea.sflag [#allocation5], %s481
          %s483 = sand.u32 %s160, 1
          %s484 = smul.addr %s483, 8
          %s485 = scalar_lea.vmem [#allocation11], %s484
          %486 = dma.done %s482, 128
        $region64: #{tpu_custom_call.1} parent=59 // pred_fallthru
          _
      $region60: #{tpu_custom_call.1} parent=5 // pred_fallthru
        _
    $region6: #{tpu_custom_call.1} parent=1 // loop_footer
      %s26 = sadd.s32 1, %s22
    $region7: #{tpu_custom_call.1} parent=1 // loop_footer_branch
      %21 = sbr.rel target = $region3
    $region8: #{tpu_custom_call.1} parent=1 // loop_exit
      _
    %487 = vsyncpa [#allocation4], 1
    %s488 = scalar_lea.sflag [#allocation4], 1
    %489 = vsyncpa %s488, 1
    %490 = vsyncpa [#allocation7], 1
    %s491 = scalar_lea.sflag [#allocation7], 1
    %492 = vsyncpa %s491, 1
    %493 = vsyncpa [#allocation10], 1
    %s494 = scalar_lea.sflag [#allocation10], 1
    %495 = vsyncpa %s494, 1
    %496 = vsyncpa [#allocation5], 1
    %s497 = scalar_lea.sflag [#allocation5], 1
    %498 = vsyncpa %s497, 1

</llo_original>
